<compile_context>
chip_gen: v5e
topology: v5e:2x2
jax: 0.10.0
libtpu: 0.0.40
codegen_flags: <defaults>
</compile_context>

<pallas_src>
import functools

import jax
import jax.numpy as jnp
from jax.experimental import pallas as pl
from jax.experimental.pallas import tpu as pltpu


def _round_up(x, m):
    return ((x + m - 1) // m) * m


def _ray_march_kernel(minmax_ref, tri_ref, colors_ref, dens_ref, depths_ref,
                      rgb_ref, depth_ref, weights_ref,
                      *, white_back, clamp_mode):
    depths = depths_ref[...].astype(jnp.float32)      # (S, TN)
    dens = dens_ref[...].astype(jnp.float32)          # (S, TN)
    colors = colors_ref[...].astype(jnp.float32)      # (C, S, TN)

    # midpoints / deltas along the sample (sublane) axis
    deltas = depths[1:, :] - depths[:-1, :]                       # (S-1, TN)
    depths_mid = 0.5 * (depths[1:, :] + depths[:-1, :])           # (S-1, TN)
    dens_mid = 0.5 * (dens[1:, :] + dens[:-1, :])                 # (S-1, TN)
    colors_mid = 0.5 * (colors[:, 1:, :] + colors[:, :-1, :])     # (C, S-1, TN)

    # activation_factory(rendering_options): EG3D 'softplus' mode -> softplus(x - 1)
    if clamp_mode == "softplus":
        dens_mid = jax.nn.softplus(dens_mid - 1.0)
    else:
        dens_mid = jnp.maximum(dens_mid, 0.0)

    density_delta = dens_mid * deltas
    alpha = 1.0 - jnp.exp(-density_delta)                         # (S-1, TN)

    # Exclusive cumprod of the per-sample transmittance, in log space:
    #   T_i = prod_{j<i}(1 - alpha_j + 1e-10) = exp( L @ log1p(1e-10 - alpha) )
    # where L is the strictly-lower-triangular ones matrix (passed in, tiny).
    # The matmul runs on the (otherwise idle) MXU; exp/log1p go to the EUP.
    log_t = jnp.log1p(1e-10 - alpha)                              # (S-1, TN)
    log_excl = jnp.dot(tri_ref[...], log_t,
                       preferred_element_type=jnp.float32)        # (S-1, TN)
    weights = alpha * jnp.exp(log_excl)                           # (S-1, TN)

    rgb = jnp.sum(weights[None, :, :] * colors_mid, axis=1)       # (C, TN)
    depth = jnp.sum(weights * depths_mid, axis=0, keepdims=True)  # (1, TN)

    # nan_to_num(., inf) then clamp to global [min(depths), max(depths)]
    depth = jnp.where(jnp.isnan(depth), jnp.float32(jnp.inf), depth)
    depth = jnp.clip(depth, minmax_ref[0], minmax_ref[1])

    if white_back:
        w_total = jnp.sum(weights, axis=0, keepdims=True)         # (1, TN)
        rgb = rgb + 1.0 - w_total

    rgb_ref[...] = rgb.astype(rgb_ref.dtype)
    depth_ref[...] = depth.astype(depth_ref.dtype)
    weights_ref[...] = weights.astype(weights_ref.dtype)


def mip_ray_marcher2(colors, densities, depths, rendering_options, normals=None,
                     *, tile_n=2048):
    """colors: (B,R,S,C)  densities: (B,R,S,1)  depths: (B,R,S,1)
    returns (composite_rgb (B,R,C), composite_depth (B,R,1), weights (B,R,S-1,1))."""
    # TODO(synk): `normals is not None` branch not implemented (the reference
    # run_forward does not handle normals either).
    assert normals is None
    B, R, S, C = colors.shape
    N = B * R
    dtype = colors.dtype

    white_back = bool(rendering_options.get("white_back", False))
    clamp_mode = rendering_options.get("clamp_mode", "softplus")

    # Global depth clamp bounds — two scalars, computed on the unpadded input.
    minmax = jnp.stack([jnp.min(depths), jnp.max(depths)]).astype(jnp.float32)

    # Wrapper-side layout plumbing: (B,R,S,C) -> (C,S,N), (B,R,S,1) -> (S,N).
    # TODO(synk): if the upstream producer can emit rays-last (C,S,N) directly,
    # this extra HBM pass over the largest array disappears.
    colors_t = jnp.transpose(colors.reshape(N, S, C), (2, 1, 0))      # (C, S, N)
    dens_t = jnp.transpose(densities.reshape(N, S), (1, 0))           # (S, N)
    depths_t = jnp.transpose(depths.reshape(N, S), (1, 0))            # (S, N)

    # --- ray-tile size (lane axis) -------------------------------------------
    # Budget VMEM per grid step: double-buffered input/output blocks plus the
    # in-kernel f32 intermediates.  We request a 48 MiB scoped-VMEM limit
    # (safe on v7x's 64 MiB physical VMEM) and size tiles against a 28 MiB
    # budget so the estimate has ~1.7x headroom for compiler temporaries.
    VMEM_LIMIT = 48 * 1024 * 1024
    VMEM_BUDGET = 28 * 1024 * 1024
    itemsize = 4  # all in-kernel math is f32
    bytes_per_ray = itemsize * (
        2 * (C * S + 2 * S)             # double-buffered input blocks
        + 2 * (C + S)                   # double-buffered output blocks
        + 2 * C * (S - 1)               # colors_mid + weighted-color product
        + 8 * (S - 1)                   # deltas/mids/alpha/log_t/weights temps
        + C + 2)                        # rgb / depth / weight_total rows
    max_tn = max(128, (VMEM_BUDGET // bytes_per_ray) // 128 * 128)
    TN = min(tile_n, max_tn, _round_up(N, 128))
    TN = max(128, (TN // 128) * 128)

    # Pad the ray axis up to a multiple of TN (padded rays compute harmless
    # values that are sliced off below).  For typical ray counts (H*W grids)
    # N is already a multiple of TN and no pad copy is issued.
    N_pad = _round_up(N, TN)
    if N_pad != N:
        pad = N_pad - N
        colors_t = jnp.pad(colors_t, ((0, 0), (0, 0), (0, pad)))
        dens_t = jnp.pad(dens_t, ((0, 0), (0, pad)))
        depths_t = jnp.pad(depths_t, ((0, 0), (0, pad)))

    # Strictly-lower-triangular ones matrix for the exclusive cumsum on the MXU.
    tri = jnp.tril(jnp.ones((S - 1, S - 1), jnp.float32), k=-1)

    grid = (N_pad // TN,)
    kernel = functools.partial(_ray_march_kernel,
                               white_back=white_back, clamp_mode=clamp_mode)

    rgb_t, depth_t, weights_t = pl.pallas_call(
        kernel,
        grid=grid,
        in_specs=[
            pl.BlockSpec(memory_space=pltpu.MemorySpace.SMEM),        # minmax (2,)
            pl.BlockSpec((S - 1, S - 1), lambda i: (0, 0)),           # tri (S-1,S-1)
            pl.BlockSpec((C, S, TN), lambda i: (0, 0, i)),            # colors (C,S,Np)
            pl.BlockSpec((S, TN), lambda i: (0, i)),                  # densities (S,Np)
            pl.BlockSpec((S, TN), lambda i: (0, i)),                  # depths (S,Np)
        ],
        out_specs=[
            pl.BlockSpec((C, TN), lambda i: (0, i)),                  # rgb (C,Np)
            pl.BlockSpec((1, TN), lambda i: (0, i)),                  # depth (1,Np)
            pl.BlockSpec((S - 1, TN), lambda i: (0, i)),              # weights (S-1,Np)
        ],
        out_shape=(
            jax.ShapeDtypeStruct((C, N_pad), dtype),
            jax.ShapeDtypeStruct((1, N_pad), dtype),
            jax.ShapeDtypeStruct((S - 1, N_pad), dtype),
        ),
        compiler_params=pltpu.CompilerParams(
            dimension_semantics=("parallel",),
            vmem_limit_bytes=VMEM_LIMIT),
    )(minmax, tri, colors_t, dens_t, depths_t)

    composite_rgb = jnp.transpose(rgb_t[:, :N], (1, 0)).reshape(B, R, C)
    composite_depth = jnp.transpose(depth_t[:, :N], (1, 0)).reshape(B, R, 1)
    weights = jnp.transpose(weights_t[:, :N], (1, 0)).reshape(B, R, S - 1, 1)
    return composite_rgb, composite_depth, weights


def _reference(colors, densities, depths, rendering_options):
    """Pure-JAX port of the PyTorch forward, for a sanity check."""
    deltas = depths[:, :, 1:] - depths[:, :, :-1]
    colors_mid = (colors[:, :, :-1] + colors[:, :, 1:]) / 2
    densities_mid = (densities[:, :, :-1] + densities[:, :, 1:]) / 2
    depths_mid = (depths[:, :, :-1] + depths[:, :, 1:]) / 2
    if rendering_options.get("clamp_mode", "softplus") == "softplus":
        densities_mid = jax.nn.softplus(densities_mid - 1.0)
    else:
        densities_mid = jnp.maximum(densities_mid, 0.0)
    density_delta = densities_mid * deltas
    alpha = 1 - jnp.exp(-density_delta)
    alpha_shifted = jnp.concatenate(
        [jnp.ones_like(alpha[:, :, :1]), 1 - alpha + 1e-10], axis=-2)
    weights = alpha * jnp.cumprod(alpha_shifted, axis=-2)[:, :, :-1]
    composite_rgb = jnp.sum(weights * colors_mid, axis=-2)
    weight_total = weights.sum(2)
    composite_depth = jnp.sum(weights * depths_mid, axis=-2)
    composite_depth = jnp.nan_to_num(composite_depth, nan=jnp.inf)
    composite_depth = jnp.clip(composite_depth, jnp.min(depths), jnp.max(depths))
    if rendering_options.get("white_back", False):
        composite_rgb = composite_rgb + 1 - weight_total
    return composite_rgb, composite_depth, weights


if __name__ == "__main__":
    key = jax.random.PRNGKey(0)
    B, R, S, C = 2, 200, 8, 4                       # batch, rays, samples, color channels
    k1, k2, k3 = jax.random.split(key, 3)

    colors = jax.random.uniform(k1, (B, R, S, C), dtype=jnp.float32)
    densities = jax.random.normal(k2, (B, R, S, 1), dtype=jnp.float32)
    # monotonically increasing sample depths per ray
    depths = 0.1 + jnp.cumsum(
        jax.random.uniform(k3, (B, R, S, 1), dtype=jnp.float32, minval=0.05, maxval=0.3),
        axis=2)

    rendering_options = {"clamp_mode": "softplus", "white_back": True}
    rgb_ref, depth_ref, weights_ref = _reference(colors, densities, depths, rendering_options)

    # Default (large) ray tile.
    rgb, depth, weights = mip_ray_marcher2(colors, densities, depths, rendering_options)
    jax.block_until_ready((rgb, depth, weights))
    assert rgb.shape == (B, R, C) and depth.shape == (B, R, 1) and weights.shape == (B, R, S - 1, 1)
    assert jnp.allclose(rgb, rgb_ref, atol=1e-3, rtol=1e-3)
    assert jnp.allclose(depth, depth_ref, atol=1e-3, rtol=1e-3)
    assert jnp.allclose(weights[..., 0], weights_ref[..., 0], atol=1e-3, rtol=1e-3)

    # Smaller tile: exercises the multi-step grid and the padded ray tail
    # (N = 400 -> N_pad = 512 with TN = 128, grid = (4,)).
    rgb2, depth2, weights2 = mip_ray_marcher2(colors, densities, depths,
                                              rendering_options, tile_n=128)
    jax.block_until_ready((rgb2, depth2, weights2))
    assert jnp.allclose(rgb2, rgb_ref, atol=1e-3, rtol=1e-3)
    assert jnp.allclose(depth2, depth_ref, atol=1e-3, rtol=1e-3)
    assert jnp.allclose(weights2[..., 0], weights_ref[..., 0], atol=1e-3, rtol=1e-3)

    print("KERNEL_OK")
</pallas_src>

<mosaic_0001>
module attributes {stable_mosaic.version = 11 : i64} {
  func.func @_ray_march_kernel(%arg0: i32, %arg1: memref<2xf32, #tpu.memory_space<smem>>, %arg2: memref<7x7xf32, #tpu.memory_space<vmem>>, %arg3: memref<4x8x512xf32, #tpu.memory_space<vmem>>, %arg4: memref<8x512xf32, #tpu.memory_space<vmem>>, %arg5: memref<8x512xf32, #tpu.memory_space<vmem>>, %arg6: memref<4x512xf32, #tpu.memory_space<vmem>>, %arg7: memref<1x512xf32, #tpu.memory_space<vmem>>, %arg8: memref<7x512xf32, #tpu.memory_space<vmem>>) attributes {dimension_semantics = [#tpu.dimension_semantics<parallel>], iteration_bounds = array<i64: 1>, scalar_prefetch = 0 : i64, scratch_operands = 0 : i64, tpu.core_type = #tpu.core_type<tc>, window_params = [{transform_indices = @transform_0, window_bounds = array<i64: 2>}, {pipeline_mode = #tpu.pipeline_mode<synchronous>, transform_indices = @transform_1, window_bounds = array<i64: 7, 7>}, {transform_indices = @transform_2, window_bounds = array<i64: 4, 8, 512>}, {transform_indices = @transform_3, window_bounds = array<i64: 8, 512>}, {transform_indices = @transform_4, window_bounds = array<i64: 8, 512>}, {transform_indices = @transform_5, window_bounds = array<i64: 4, 512>}, {transform_indices = @transform_6, window_bounds = array<i64: 1, 512>}, {transform_indices = @transform_7, window_bounds = array<i64: 7, 512>}]} {
    %c0 = arith.constant 0 : index
    %c0_0 = arith.constant 0 : index
    %0 = vector.load %arg5[%c0, %c0_0] : memref<8x512xf32, #tpu.memory_space<vmem>>, vector<8x512xf32>
    %c0_1 = arith.constant 0 : index
    %c0_2 = arith.constant 0 : index
    %1 = vector.load %arg4[%c0_1, %c0_2] : memref<8x512xf32, #tpu.memory_space<vmem>>, vector<8x512xf32>
    %c0_3 = arith.constant 0 : index
    %c0_4 = arith.constant 0 : index
    %c0_5 = arith.constant 0 : index
    %2 = vector.load %arg3[%c0_3, %c0_4, %c0_5] : memref<4x8x512xf32, #tpu.memory_space<vmem>>, vector<4x8x512xf32>
    %3 = vector.extract_strided_slice %0 {offsets = [1, 0], sizes = [7, 512], strides = [1, 1]} : vector<8x512xf32> to vector<7x512xf32>
    %4 = vector.extract_strided_slice %0 {offsets = [0, 0], sizes = [7, 512], strides = [1, 1]} : vector<8x512xf32> to vector<7x512xf32>
    %5 = arith.subf %3, %4 : vector<7x512xf32>
    %6 = vector.extract_strided_slice %0 {offsets = [1, 0], sizes = [7, 512], strides = [1, 1]} : vector<8x512xf32> to vector<7x512xf32>
    %7 = vector.extract_strided_slice %0 {offsets = [0, 0], sizes = [7, 512], strides = [1, 1]} : vector<8x512xf32> to vector<7x512xf32>
    %8 = arith.addf %6, %7 : vector<7x512xf32>
    %cst = arith.constant 5.000000e-01 : f32
    %9 = vector.broadcast %cst : f32 to vector<7x512xf32>
    %10 = arith.mulf %9, %8 : vector<7x512xf32>
    %11 = vector.extract_strided_slice %1 {offsets = [1, 0], sizes = [7, 512], strides = [1, 1]} : vector<8x512xf32> to vector<7x512xf32>
    %12 = vector.extract_strided_slice %1 {offsets = [0, 0], sizes = [7, 512], strides = [1, 1]} : vector<8x512xf32> to vector<7x512xf32>
    %13 = arith.addf %11, %12 : vector<7x512xf32>
    %cst_6 = arith.constant 5.000000e-01 : f32
    %14 = vector.broadcast %cst_6 : f32 to vector<7x512xf32>
    %15 = arith.mulf %14, %13 : vector<7x512xf32>
    %16 = vector.extract_strided_slice %2 {offsets = [0, 1, 0], sizes = [4, 7, 512], strides = [1, 1, 1]} : vector<4x8x512xf32> to vector<4x7x512xf32>
    %17 = vector.extract_strided_slice %2 {offsets = [0, 0, 0], sizes = [4, 7, 512], strides = [1, 1, 1]} : vector<4x8x512xf32> to vector<4x7x512xf32>
    %18 = arith.addf %16, %17 : vector<4x7x512xf32>
    %cst_7 = arith.constant 5.000000e-01 : f32
    %19 = vector.broadcast %cst_7 : f32 to vector<4x7x512xf32>
    %20 = arith.mulf %19, %18 : vector<4x7x512xf32>
    %cst_8 = arith.constant 1.000000e+00 : f32
    %21 = vector.broadcast %cst_8 : f32 to vector<7x512xf32>
    %22 = arith.subf %15, %21 : vector<7x512xf32>
    %cst_9 = arith.constant 0.000000e+00 : f32
    %23 = vector.broadcast %cst_9 : f32 to vector<7x512xf32>
    %24 = arith.maximumf %22, %23 : vector<7x512xf32>
    %25 = vector.broadcast %cst_9 : f32 to vector<7x512xf32>
    %26 = arith.subf %22, %25 : vector<7x512xf32>
    %27 = arith.cmpf one, %26, %26 : vector<7x512xf32>
    %28 = vector.broadcast %cst_9 : f32 to vector<7x512xf32>
    %29 = arith.addf %22, %28 : vector<7x512xf32>
    %30 = math.absf %26 : vector<7x512xf32>
    %cst_10 = arith.constant 0.000000e+00 : f32
    %31 = vector.broadcast %cst_10 : f32 to vector<7x512xf32>
    %32 = arith.subf %31, %30 : vector<7x512xf32>
    %33 = math.exp %32 : vector<7x512xf32>
    %34 = math.log1p %33 : vector<7x512xf32>
    %35 = arith.addf %24, %34 : vector<7x512xf32>
    %36 = arith.select %27, %29, %35 : vector<7x512xi1>, vector<7x512xf32>
    %37 = arith.mulf %36, %5 : vector<7x512xf32>
    %cst_11 = arith.constant 0.000000e+00 : f32
    %38 = vector.broadcast %cst_11 : f32 to vector<7x512xf32>
    %39 = arith.subf %38, %37 : vector<7x512xf32>
    %40 = math.exp %39 : vector<7x512xf32>
    %cst_12 = arith.constant 1.000000e+00 : f32
    %41 = vector.broadcast %cst_12 : f32 to vector<7x512xf32>
    %42 = arith.subf %41, %40 : vector<7x512xf32>
    %cst_13 = arith.constant 1.000000e-10 : f32
    %43 = vector.broadcast %cst_13 : f32 to vector<7x512xf32>
    %44 = arith.subf %43, %42 : vector<7x512xf32>
    %45 = math.log1p %44 : vector<7x512xf32>
    %c0_14 = arith.constant 0 : index
    %c0_15 = arith.constant 0 : index
    %46 = vector.load %arg2[%c0_14, %c0_15] : memref<7x7xf32, #tpu.memory_space<vmem>>, vector<7x7xf32>
    %cst_16 = arith.constant dense<0.000000e+00> : vector<7x512xf32>
    %47 = tpu.matmul %46, %45, %cst_16 {dimension_numbers = #tpu.dot_dimension_numbers<[1], [0], [0], [1], [0, 0, 1, 1], [], []>} : vector<7x7xf32>, vector<7x512xf32>, vector<7x512xf32> -> vector<7x512xf32>
    %48 = math.exp %47 : vector<7x512xf32>
    %49 = arith.mulf %42, %48 : vector<7x512xf32>
    %50 = vector.shape_cast %49 : vector<7x512xf32> to vector<1x7x512xf32>
    %51 = vector.broadcast %50 : vector<1x7x512xf32> to vector<4x7x512xf32>
    %52 = arith.mulf %51, %20 : vector<4x7x512xf32>
    %cst_17 = arith.constant dense<0.000000e+00> : vector<4x512xf32>
    %53 = vector.multi_reduction <add>, %52, %cst_17 [1] : vector<4x7x512xf32> to vector<4x512xf32>
    %54 = arith.mulf %49, %10 : vector<7x512xf32>
    %cst_18 = arith.constant dense<0.000000e+00> : vector<512xf32>
    %55 = vector.multi_reduction <add>, %54, %cst_18 [0] : vector<7x512xf32> to vector<512xf32>
    %56 = vector.shape_cast %55 : vector<512xf32> to vector<1x512xf32>
    %57 = arith.cmpf one, %56, %56 : vector<1x512xf32>
    %cst_19 = arith.constant 0x7F800000 : f32
    %58 = vector.broadcast %cst_19 : f32 to vector<1x512xf32>
    %59 = arith.select %57, %58, %56 : vector<1x512xi1>, vector<1x512xf32>
    %c0_20 = arith.constant 0 : index
    %60 = memref.load %arg1[%c0_20] : memref<2xf32, #tpu.memory_space<smem>>
    %c1 = arith.constant 1 : index
    %61 = memref.load %arg1[%c1] : memref<2xf32, #tpu.memory_space<smem>>
    %62 = vector.broadcast %60 : f32 to vector<1x512xf32>
    %63 = arith.maximumf %62, %59 : vector<1x512xf32>
    %64 = vector.broadcast %61 : f32 to vector<1x512xf32>
    %65 = arith.minimumf %64, %63 : vector<1x512xf32>
    %cst_21 = arith.constant dense<0.000000e+00> : vector<512xf32>
    %66 = vector.multi_reduction <add>, %49, %cst_21 [0] : vector<7x512xf32> to vector<512xf32>
    %67 = vector.shape_cast %66 : vector<512xf32> to vector<1x512xf32>
    %cst_22 = arith.constant 1.000000e+00 : f32
    %68 = vector.broadcast %cst_22 : f32 to vector<4x512xf32>
    %69 = arith.addf %53, %68 : vector<4x512xf32>
    %70 = vector.broadcast %67 : vector<1x512xf32> to vector<4x512xf32>
    %71 = arith.subf %69, %70 : vector<4x512xf32>
    %c0_23 = arith.constant 0 : index
    %c0_24 = arith.constant 0 : index
    %72 = vector.load %arg6[%c0_23, %c0_24] : memref<4x512xf32, #tpu.memory_space<vmem>>, vector<4x512xf32>
    tpu.vector_store %arg6[%c0_23, %c0_24], %71 {strides = array<i32>} : memref<4x512xf32, #tpu.memory_space<vmem>>, vector<4x512xf32>,
    %c0_25 = arith.constant 0 : index
    %c0_26 = arith.constant 0 : index
    %73 = vector.load %arg7[%c0_25, %c0_26] : memref<1x512xf32, #tpu.memory_space<vmem>>, vector<1x512xf32>
    tpu.vector_store %arg7[%c0_25, %c0_26], %65 {strides = array<i32>} : memref<1x512xf32, #tpu.memory_space<vmem>>, vector<1x512xf32>,
    %c0_27 = arith.constant 0 : index
    %c0_28 = arith.constant 0 : index
    %74 = vector.load %arg8[%c0_27, %c0_28] : memref<7x512xf32, #tpu.memory_space<vmem>>, vector<7x512xf32>
    tpu.vector_store %arg8[%c0_27, %c0_28], %49 {strides = array<i32>} : memref<7x512xf32, #tpu.memory_space<vmem>>, vector<7x512xf32>,
    return
  }
  func.func @transform_0(%arg0: i32) -> i32 {
    %c0_i32 = arith.constant 0 : i32
    %c0_i32_0 = arith.constant 0 : i32
    return %c0_i32 : i32
  }
  func.func @transform_1(%arg0: i32) -> (i32, i32) {
    %c0_i32 = arith.constant 0 : i32
    %c0_i32_0 = arith.constant 0 : i32
    %c0_i32_1 = arith.constant 0 : i32
    return %c0_i32, %c0_i32_0 : i32, i32
  }
  func.func @transform_2(%arg0: i32) -> (i32, i32, i32) {
    %c0_i32 = arith.constant 0 : i32
    %c0_i32_0 = arith.constant 0 : i32
    %c0_i32_1 = arith.constant 0 : i32
    return %c0_i32, %c0_i32_0, %arg0 : i32, i32, i32
  }
  func.func @transform_3(%arg0: i32) -> (i32, i32) {
    %c0_i32 = arith.constant 0 : i32
    %c0_i32_0 = arith.constant 0 : i32
    return %c0_i32, %arg0 : i32, i32
  }
  func.func @transform_4(%arg0: i32) -> (i32, i32) {
    %c0_i32 = arith.constant 0 : i32
    %c0_i32_0 = arith.constant 0 : i32
    return %c0_i32, %arg0 : i32, i32
  }
  func.func @transform_5(%arg0: i32) -> (i32, i32) {
    %c0_i32 = arith.constant 0 : i32
    %c0_i32_0 = arith.constant 0 : i32
    return %c0_i32, %arg0 : i32, i32
  }
  func.func @transform_6(%arg0: i32) -> (i32, i32) {
    %c0_i32 = arith.constant 0 : i32
    %c0_i32_0 = arith.constant 0 : i32
    return %c0_i32, %arg0 : i32, i32
  }
  func.func @transform_7(%arg0: i32) -> (i32, i32) {
    %c0_i32 = arith.constant 0 : i32
    %c0_i32_0 = arith.constant 0 : i32
    return %c0_i32, %arg0 : i32, i32
  }
}

</mosaic_0001>

<llo_original>
// kernel: tpu_custom_call.1
$region0: #{tpu_custom_call.1}
  #allocation0 [shape = 'u32[]', space=smem, size = 0x4, offset = 0x4, fixed_abs, tag = 'smem constant byte address 0x4 - core index']
  #allocation1 [shape = 'u32[72,128]{1,0:T(1,128)}', space=vmem, size = 0x9000, scoped, tag = 'internal scratch']
  %s0 = inlined_call_operand.hbm [shape: f32[2], index: 0, kind: input, shape index: {}]
  %s1 = inlined_call_operand.hbm [shape: f32[7,7], index: 1, kind: input, shape index: {}]
  %s2 = inlined_call_operand.hbm [shape: f32[4,8,512], index: 2, kind: input, shape index: {}]
  %s3 = inlined_call_operand.hbm [shape: f32[8,512], index: 3, kind: input, shape index: {}]
  %s4 = inlined_call_operand.hbm [shape: f32[8,512], index: 4, kind: input, shape index: {}]
  %s5 = inlined_call_operand.hbm [shape: f32[4,512], index: 5, kind: output, shape index: {0}]
  %s6 = inlined_call_operand.hbm [shape: f32[1,512], index: 6, kind: output, shape index: {1}]
  %s7 = inlined_call_operand.hbm [shape: f32[7,512], index: 7, kind: output, shape index: {2}]
  %8 = xla_tuple %s5, %s6, %s7
  %s9 = sld [smem:[#allocation0]]
  $region66: #{tpu_custom_call.1} parent=0
    _
  %s11 = ssub.s32 1, %s9
  %s12 = scalar_select 0, %s11, %s9
  $region1: #{tpu_custom_call.1} parent=0
    #allocation2 [shape = 'u8[512]{0}', space=smem, size = 0x200, scoped, tag = 'input window, operand 0, single buffered']
    #allocation3 [shape = 's32[1]{0}', space=sflag, size = 0x4, scoped, tag = 'scoped memory for tpu_custom_call.1']
    #allocation4 [shape = 's32[1]{0}', space=sflag, size = 0x4, scoped, tag = 'scoped memory for tpu_custom_call.1']
    #allocation5 [shape = 's32[1]{0}', space=sflag, size = 0x4, scoped, tag = 'scoped memory for tpu_custom_call.1']
    #allocation6 [shape = 'u8[4096]{0}', space=vmem, size = 0x1000, scoped, tag = 'input window, operand 1, single buffered']
    #allocation7 [shape = 'u8[65536]{0}', space=vmem, size = 0x10000, scoped, tag = 'input window, operand 2, single buffered']
    #allocation8 [shape = 's32[1]{0}', space=sflag, size = 0x4, scoped, tag = 'scoped memory for tpu_custom_call.1']
    #allocation9 [shape = 'u8[16384]{0}', space=vmem, size = 0x4000, scoped, tag = 'input window, operand 3, single buffered']
    #allocation10 [shape = 'u8[16384]{0}', space=vmem, size = 0x4000, scoped, tag = 'input window, operand 4, single buffered']
    #allocation11 [shape = 's32[1]{0}', space=sflag, size = 0x4, scoped, tag = 'scoped memory for tpu_custom_call.1']
    #allocation12 [shape = 'u8[8192]{0}', space=vmem, size = 0x2000, scoped, tag = 'output window, operand 0, single buffered']
    #allocation13 [shape = 'u8[2048]{0}', space=vmem, size = 0x800, scoped, tag = 'output window, operand 1, single buffered']
    #allocation14 [shape = 's32[1]{0}', space=sflag, size = 0x4, scoped, tag = 'scoped memory for tpu_custom_call.1']
    #allocation15 [shape = 'u8[16384]{0}', space=vmem, size = 0x4000, scoped, tag = 'output window, operand 2, single buffered']
    %13 = vsyncpa [#allocation5], 0
    %14 = vsyncpa [#allocation3], 0
    %15 = vsyncpa [#allocation8], 0
    %16 = vsyncpa [#allocation11], 0
    %17 = vsyncpa [#allocation4], 0
    %18 = vsyncpa [#allocation14], 0
    // Predicated region
    $region2: #{tpu_custom_call.1} parent=1 // pred_check
      _
    $region3: #{tpu_custom_call.1} parent=1 // pred_check_branch
      %20 = sbr.rel (0) target = $region5
    $region4: #{tpu_custom_call.1} parent=1 // pred_region
      %22 = vsyncadd [#allocation5], 0
      %s24 = sshll.u32 %s0, 4
      %s25 = int_to_ptr.hbm [resolvable:$true] %s24
      %27 = dma.hbm_to_smem %s25, 16, [#allocation2], [#allocation5]
    $region5: #{tpu_custom_call.1} parent=1 // pred_fallthru
      _
    // Predicated region
    $region6: #{tpu_custom_call.1} parent=1 // pred_check
      _
    $region7: #{tpu_custom_call.1} parent=1 // pred_check_branch
      %29 = sbr.rel (0) target = $region9
    $region8: #{tpu_custom_call.1} parent=1 // pred_region
      %31 = vsyncadd [#allocation3], 0
      %s33 = sshll.u32 %s1, 4
      %s34 = int_to_ptr.hbm [resolvable:$true] %s33
      %s35 = sshll.u32 [#allocation6], 4
      %s36 = int_to_ptr.vmem [resolvable:$true] %s35
      %38 = dma.hbm_to_vmem [thread:$0]  %s34, 128, %s36, [#allocation3]
    $region9: #{tpu_custom_call.1} parent=1 // pred_fallthru
      _
    // Predicated region
    $region10: #{tpu_custom_call.1} parent=1 // pred_check
      _
    $region11: #{tpu_custom_call.1} parent=1 // pred_check_branch
      %40 = sbr.rel (0) target = $region13
    $region12: #{tpu_custom_call.1} parent=1 // pred_region
      %42 = vsyncadd [#allocation8], 0
      %s43 = sshll.u32 %s2, 4
      %s44 = int_to_ptr.hbm [resolvable:$true] %s43
      %s45 = sshll.u32 [#allocation7], 4
      %s46 = int_to_ptr.vmem [resolvable:$true] %s45
      %51 = dma.hbm_to_vmem [thread:$0]  %s44, 2048, %s46, [#allocation8], 512, 512, 32
    $region13: #{tpu_custom_call.1} parent=1 // pred_fallthru
      _
    // Predicated region
    $region14: #{tpu_custom_call.1} parent=1 // pred_check
      _
    $region15: #{tpu_custom_call.1} parent=1 // pred_check_branch
      %53 = sbr.rel (0) target = $region17
    $region16: #{tpu_custom_call.1} parent=1 // pred_region
      %55 = vsyncadd [#allocation8], 0
      %s57 = sshll.u32 %s3, 4
      %s58 = int_to_ptr.hbm [resolvable:$true] %s57
      %s59 = sshll.u32 [#allocation9], 4
      %s60 = int_to_ptr.vmem [resolvable:$true] %s59
      %62 = dma.hbm_to_vmem [thread:$0]  %s58, 512, %s60, [#allocation8]
    $region17: #{tpu_custom_call.1} parent=1 // pred_fallthru
      _
    // Predicated region
    $region18: #{tpu_custom_call.1} parent=1 // pred_check
      _
    $region19: #{tpu_custom_call.1} parent=1 // pred_check_branch
      %64 = sbr.rel (0) target = $region21
    $region20: #{tpu_custom_call.1} parent=1 // pred_region
      %66 = vsyncadd [#allocation11], 0
      %s68 = sshll.u32 %s4, 4
      %s69 = int_to_ptr.hbm [resolvable:$true] %s68
      %s70 = sshll.u32 [#allocation10], 4
      %s71 = int_to_ptr.vmem [resolvable:$true] %s70
      %73 = dma.hbm_to_vmem [thread:$0]  %s69, 512, %s71, [#allocation11]
    $region21: #{tpu_custom_call.1} parent=1 // pred_fallthru
      _
    // Predicated region
    $region22: #{tpu_custom_call.1} parent=1 // pred_check
      _
    $region23: #{tpu_custom_call.1} parent=1 // pred_check_branch
      %75 = sbr.rel (0) target = $region25
    $region24: #{tpu_custom_call.1} parent=1 // pred_region
      %77 = dma.done [#allocation5], 16
    $region25: #{tpu_custom_call.1} parent=1 // pred_fallthru
      _
    // Predicated region
    $region26: #{tpu_custom_call.1} parent=1 // pred_check
      _
    $region27: #{tpu_custom_call.1} parent=1 // pred_check_branch
      %79 = sbr.rel (0) target = $region29
    $region28: #{tpu_custom_call.1} parent=1 // pred_region
      %81 = dma.done [#allocation3], 128
    $region29: #{tpu_custom_call.1} parent=1 // pred_fallthru
      _
    // Predicated region
    $region30: #{tpu_custom_call.1} parent=1 // pred_check
      _
    $region31: #{tpu_custom_call.1} parent=1 // pred_check_branch
      %83 = sbr.rel (0) target = $region33
    $region32: #{tpu_custom_call.1} parent=1 // pred_region
      %85 = dma.done [#allocation8], 2048
    $region33: #{tpu_custom_call.1} parent=1 // pred_fallthru
      _
    // Predicated region
    $region34: #{tpu_custom_call.1} parent=1 // pred_check
      _
    $region35: #{tpu_custom_call.1} parent=1 // pred_check_branch
      %87 = sbr.rel (0) target = $region37
    $region36: #{tpu_custom_call.1} parent=1 // pred_region
      %89 = dma.done [#allocation8], 512
    $region37: #{tpu_custom_call.1} parent=1 // pred_fallthru
      _
    // Predicated region
    $region38: #{tpu_custom_call.1} parent=1 // pred_check
      _
    $region39: #{tpu_custom_call.1} parent=1 // pred_check_branch
      %91 = sbr.rel (0) target = $region41
    $region40: #{tpu_custom_call.1} parent=1 // pred_region
      %93 = dma.done [#allocation11], 512
    $region41: #{tpu_custom_call.1} parent=1 // pred_fallthru
      _
    %94 = sfence
    %v95 = vld [vmem:[#allocation10] sm:$0xff]
    %v96 = vld [vmem:[#allocation10 + $0x8] sm:$0xff]
    %v97 = vld [vmem:[#allocation10 + $0x10] sm:$0xff]
    %v98 = vld [vmem:[#allocation10 + $0x18] sm:$0xff]
    %v99 = vld [vmem:[#allocation9] sm:$0xff]
    %v100 = vld [vmem:[#allocation9 + $0x8] sm:$0xff]
    %v101 = vld [vmem:[#allocation9 + $0x10] sm:$0xff]
    %v102 = vld [vmem:[#allocation9 + $0x18] sm:$0xff]
    %v103 = vld [vmem:[#allocation7] sm:$0xff]
    %v104 = vld [vmem:[#allocation7 + $0x8] sm:$0xff]
    %v105 = vld [vmem:[#allocation7 + $0x10] sm:$0xff]
    %v106 = vld [vmem:[#allocation7 + $0x18] sm:$0xff]
    %v107 = vld [vmem:[#allocation7 + $0x20] sm:$0xff]
    %v108 = vld [vmem:[#allocation7 + $0x28] sm:$0xff]
    %v109 = vld [vmem:[#allocation7 + $0x30] sm:$0xff]
    %v110 = vld [vmem:[#allocation7 + $0x38] sm:$0xff]
    %v111 = vld [vmem:[#allocation7 + $0x40] sm:$0xff]
    %v112 = vld [vmem:[#allocation7 + $0x48] sm:$0xff]
    %v113 = vld [vmem:[#allocation7 + $0x50] sm:$0xff]
    %v114 = vld [vmem:[#allocation7 + $0x58] sm:$0xff]
    %v115 = vld [vmem:[#allocation7 + $0x60] sm:$0xff]
    %v116 = vld [vmem:[#allocation7 + $0x68] sm:$0xff]
    %v117 = vld [vmem:[#allocation7 + $0x70] sm:$0xff]
    %v118 = vld [vmem:[#allocation7 + $0x78] sm:$0xff]
    %v123 = vrot.slane %v95, 7
    %v124 = vrot.slane %v96, 7
    %v125 = vrot.slane %v97, 7
    %v126 = vrot.slane %v98, 7
    %v131 = vsub.f32 %v95, %v123
    %v132 = vsub.f32 %v96, %v124
    %v133 = vsub.f32 %v97, %v125
    %v134 = vsub.f32 %v98, %v126
    %v135 = vadd.f32 %v95, %v123
    %v136 = vadd.f32 %v96, %v124
    %v137 = vadd.f32 %v97, %v125
    %v138 = vadd.f32 %v98, %v126
    %v139 = vmul.f32 %v135, 0.5
    %v140 = vmul.f32 %v136, 0.5
    %v141 = vmul.f32 %v137, 0.5
    %v142 = vmul.f32 %v138, 0.5
    %v147 = vrot.slane %v99, 7
    %v148 = vrot.slane %v100, 7
    %v149 = vrot.slane %v101, 7
    %v150 = vrot.slane %v102, 7
    %v155 = vadd.f32 %v99, %v147
    %v156 = vadd.f32 %v100, %v148
    %v157 = vadd.f32 %v101, %v149
    %v158 = vadd.f32 %v102, %v150
    %v159 = vmul.f32 %v155, 0.5
    %v160 = vmul.f32 %v156, 0.5
    %v161 = vmul.f32 %v157, 0.5
    %v162 = vmul.f32 %v158, 0.5
    %v179 = vrot.slane %v103, 7
    %v180 = vrot.slane %v104, 7
    %v181 = vrot.slane %v105, 7
    %v182 = vrot.slane %v106, 7
    %v183 = vrot.slane %v107, 7
    %v184 = vrot.slane %v108, 7
    %v185 = vrot.slane %v109, 7
    %v186 = vrot.slane %v110, 7
    %v187 = vrot.slane %v111, 7
    %v188 = vrot.slane %v112, 7
    %v189 = vrot.slane %v113, 7
    %v190 = vrot.slane %v114, 7
    %v191 = vrot.slane %v115, 7
    %v192 = vrot.slane %v116, 7
    %v193 = vrot.slane %v117, 7
    %v194 = vrot.slane %v118, 7
    %v211 = vadd.f32 %v103, %v179
    %v212 = vadd.f32 %v104, %v180
    %v213 = vadd.f32 %v105, %v181
    %v214 = vadd.f32 %v106, %v182
    %v215 = vadd.f32 %v107, %v183
    %v216 = vadd.f32 %v108, %v184
    %v217 = vadd.f32 %v109, %v185
    %v218 = vadd.f32 %v110, %v186
    %v219 = vadd.f32 %v111, %v187
    %v220 = vadd.f32 %v112, %v188
    %v221 = vadd.f32 %v113, %v189
    %v222 = vadd.f32 %v114, %v190
    %v223 = vadd.f32 %v115, %v191
    %v224 = vadd.f32 %v116, %v192
    %v225 = vadd.f32 %v117, %v193
    %v226 = vadd.f32 %v118, %v194
    %v227 = vmul.f32 %v211, 0.5
    %v228 = vmul.f32 %v212, 0.5
    %v229 = vmul.f32 %v213, 0.5
    %v230 = vmul.f32 %v214, 0.5
    %v231 = vmul.f32 %v215, 0.5
    %v232 = vmul.f32 %v216, 0.5
    %v233 = vmul.f32 %v217, 0.5
    %v234 = vmul.f32 %v218, 0.5
    %v235 = vmul.f32 %v219, 0.5
    %v236 = vmul.f32 %v220, 0.5
    %v237 = vmul.f32 %v221, 0.5
    %v238 = vmul.f32 %v222, 0.5
    %v239 = vmul.f32 %v223, 0.5
    %v240 = vmul.f32 %v224, 0.5
    %v241 = vmul.f32 %v225, 0.5
    %v242 = vmul.f32 %v226, 0.5
    %v243 = vsub.f32 %v159, 1.0
    %v244 = vsub.f32 %v160, 1.0
    %v245 = vsub.f32 %v161, 1.0
    %v246 = vsub.f32 %v162, 1.0
    %v247 = vmax.f32 %v243, 0.0
    %v248 = vmax.f32 %v244, 0.0
    %v249 = vmax.f32 %v245, 0.0
    %v250 = vmax.f32 %v246, 0.0
    %vm251 = vcmp.ne.f32.partialorder %v243, %v243
    %vm252 = vcmp.ne.f32.partialorder %v244, %v244
    %vm253 = vcmp.ne.f32.partialorder %v245, %v245
    %vm254 = vcmp.ne.f32.partialorder %v246, %v246
    %v255 = vadd.f32 %v243, 0.0
    %v256 = vadd.f32 %v244, 0.0
    %v257 = vadd.f32 %v245, 0.0
    %v258 = vadd.f32 %v246, 0.0
    %v259 = vand.u32 2147483647, %v243
    %v260 = vand.u32 2147483647, %v244
    %v261 = vand.u32 2147483647, %v245
    %v262 = vand.u32 2147483647, %v246
    %v263 = vsub.f32 0.0, %v259
    %v264 = vsub.f32 0.0, %v260
    %v265 = vsub.f32 0.0, %v261
    %v266 = vsub.f32 0.0, %v262
    %v267 = vmul.f32 %v263, 1.442695
    %v268 = vpow.pop %v267
    %v269 = vmul.f32 %v264, 1.442695
    %v270 = vpow.pop %v269
    %v271 = vmul.f32 %v265, 1.442695
    %v272 = vpow.pop %v271
    %v273 = vmul.f32 %v266, 1.442695
    %v274 = vpow.pop %v273
    %v275 = vadd.f32 %v268, 1.0
    %v276 = vlog2.pop %v275
    %v277 = vmul.f32 %v276, 0.6931472
    %v278 = vmul.f32 -0.5, %v268
    %v279 = vadd.f32 %v278, 1.0
    %v280 = vmul.f32 %v279, %v268
    %v281 = vand.u32 2147483647, %v268
    %vm282 = vcmp.lt.f32.partialorder %v281, 0.0004427343
    %v283 = vsel %vm282, %v280, %v277
    %v284 = vadd.f32 %v270, 1.0
    %v285 = vlog2.pop %v284
    %v286 = vmul.f32 %v285, 0.6931472
    %v287 = vmul.f32 -0.5, %v270
    %v288 = vadd.f32 %v287, 1.0
    %v289 = vmul.f32 %v288, %v270
    %v290 = vand.u32 2147483647, %v270
    %vm291 = vcmp.lt.f32.partialorder %v290, 0.0004427343
    %v292 = vsel %vm291, %v289, %v286
    %v293 = vadd.f32 %v272, 1.0
    %v294 = vlog2.pop %v293
    %v295 = vmul.f32 %v294, 0.6931472
    %v296 = vmul.f32 -0.5, %v272
    %v297 = vadd.f32 %v296, 1.0
    %v298 = vmul.f32 %v297, %v272
    %v299 = vand.u32 2147483647, %v272
    %vm300 = vcmp.lt.f32.partialorder %v299, 0.0004427343
    %v301 = vsel %vm300, %v298, %v295
    %v302 = vadd.f32 %v274, 1.0
    %v303 = vlog2.pop %v302
    %v304 = vmul.f32 %v303, 0.6931472
    %v305 = vmul.f32 -0.5, %v274
    %v306 = vadd.f32 %v305, 1.0
    %v307 = vmul.f32 %v306, %v274
    %v308 = vand.u32 2147483647, %v274
    %vm309 = vcmp.lt.f32.partialorder %v308, 0.0004427343
    %v310 = vsel %vm309, %v307, %v304
    %v311 = vadd.f32 %v247, %v283
    %v312 = vadd.f32 %v248, %v292
    %v313 = vadd.f32 %v249, %v301
    %v314 = vadd.f32 %v250, %v310
    %v315 = vsel %vm251, %v255, %v311
    %v316 = vsel %vm252, %v256, %v312
    %v317 = vsel %vm253, %v257, %v313
    %v318 = vsel %vm254, %v258, %v314
    %v319 = vmul.f32 %v315, %v131
    %v320 = vmul.f32 %v316, %v132
    %v321 = vmul.f32 %v317, %v133
    %v322 = vmul.f32 %v318, %v134
    %v323 = vsub.f32 0.0, %v319
    %v324 = vsub.f32 0.0, %v320
    %v325 = vsub.f32 0.0, %v321
    %v326 = vsub.f32 0.0, %v322
    %v327 = vmul.f32 %v323, 1.442695
    %v328 = vpow.pop %v327
    %v329 = vmul.f32 %v324, 1.442695
    %v330 = vpow.pop %v329
    %v331 = vmul.f32 %v325, 1.442695
    %v332 = vpow.pop %v331
    %v333 = vmul.f32 %v326, 1.442695
    %v334 = vpow.pop %v333
    %v335 = vsub.f32 1.0, %v328
    %v336 = vsub.f32 1.0, %v330
    %v337 = vsub.f32 1.0, %v332
    %v338 = vsub.f32 1.0, %v334
    %v339 = vsub.f32 1e-10, %v335
    %v340 = vsub.f32 1e-10, %v336
    %v341 = vsub.f32 1e-10, %v337
    %v342 = vsub.f32 1e-10, %v338
    %v343 = vadd.f32 %v339, 1.0
    %v344 = vlog2.pop %v343
    %v345 = vmul.f32 %v344, 0.6931472
    %v346 = vmul.f32 -0.5, %v339
    %v347 = vadd.f32 %v346, 1.0
    %v348 = vmul.f32 %v347, %v339
    %v349 = vand.u32 2147483647, %v339
    %vm350 = vcmp.lt.f32.partialorder %v349, 0.0004427343
    %v351 = vsel %vm350, %v348, %v345
    %v352 = vadd.f32 %v340, 1.0
    %v353 = vlog2.pop %v352
    %v354 = vmul.f32 %v353, 0.6931472
    %v355 = vmul.f32 -0.5, %v340
    %v356 = vadd.f32 %v355, 1.0
    %v357 = vmul.f32 %v356, %v340
    %v358 = vand.u32 2147483647, %v340
    %vm359 = vcmp.lt.f32.partialorder %v358, 0.0004427343
    %v360 = vsel %vm359, %v357, %v354
    %v361 = vadd.f32 %v341, 1.0
    %v362 = vlog2.pop %v361
    %v363 = vmul.f32 %v362, 0.6931472
    %v364 = vmul.f32 -0.5, %v341
    %v365 = vadd.f32 %v364, 1.0
    %v366 = vmul.f32 %v365, %v341
    %v367 = vand.u32 2147483647, %v341
    %vm368 = vcmp.lt.f32.partialorder %v367, 0.0004427343
    %v369 = vsel %vm368, %v366, %v363
    %v370 = vadd.f32 %v342, 1.0
    %v371 = vlog2.pop %v370
    %v372 = vmul.f32 %v371, 0.6931472
    %v373 = vmul.f32 -0.5, %v342
    %v374 = vadd.f32 %v373, 1.0
    %v375 = vmul.f32 %v374, %v342
    %v376 = vand.u32 2147483647, %v342
    %vm377 = vcmp.lt.f32.partialorder %v376, 0.0004427343
    %v378 = vsel %vm377, %v375, %v372
    %v379 = vld [vmem:[#allocation6] sm:$0x7f]
    %v384 = vrot.slane %v351, 1
    %v385 = vrot.slane %v360, 1
    %v386 = vrot.slane %v369, 1
    %v387 = vrot.slane %v378, 1
    %vm388 = vcmask 56320
    %v390 = vsel %vm388, %v379, 0
    %vm392 = vcmask 1046528
    %v393 = vsel %vm392, %v384, 0
    %v395 = vsel %vm392, %v385, 0
    %v397 = vsel %vm392, %v386, 0
    %v399 = vsel %vm392, %v387, 0
    %401 = vmatpush.msra.mxu0 0.0
    %402 = vmatpush.msra.mxu0 0.0
    %403 = vmatpush.msra.mxu0 0.0
    %404 = vmatpush.msra.mxu0 0.0
    %405 = vmatpush.msra.mxu0 0.0
    %406 = vmatpush.msra.mxu0 0.0
    %407 = vmatpush.msra.mxu0 0.0
    %408 = vmatpush.msra.mxu0 0.0
    %409 = vmatpush.msra.mxu0 0.0
    %410 = vmatpush.msra.mxu0 0.0
    %411 = vmatpush.msra.mxu0 0.0
    %412 = vmatpush.msra.mxu0 0.0
    %413 = vmatpush.msra.mxu0 0.0
    %414 = vmatpush.msra.mxu0 0.0
    %415 = vmatpush.msra.mxu0 0.0
    %416 = vmatpush.msra.mxu0 %v393
    %417 = vmatmul.f32.gmra.mxu0 %v390
    %v418 = vpop.f32.mrf.mxu0
    %v419 = vadd.f32 0.0, %v418
    %420 = vdwg.mxu0
    %421 = vmatpush.msra.mxu0 0.0
    %422 = vmatpush.msra.mxu0 0.0
    %423 = vmatpush.msra.mxu0 0.0
    %424 = vmatpush.msra.mxu0 0.0
    %425 = vmatpush.msra.mxu0 0.0
    %426 = vmatpush.msra.mxu0 0.0
    %427 = vmatpush.msra.mxu0 0.0
    %428 = vmatpush.msra.mxu0 0.0
    %429 = vmatpush.msra.mxu0 0.0
    %430 = vmatpush.msra.mxu0 0.0
    %431 = vmatpush.msra.mxu0 0.0
    %432 = vmatpush.msra.mxu0 0.0
    %433 = vmatpush.msra.mxu0 0.0
    %434 = vmatpush.msra.mxu0 0.0
    %435 = vmatpush.msra.mxu0 0.0
    %436 = vmatpush.msra.mxu0 %v395
    %437 = vmatmul.f32.gmra.mxu0 %v390
    %v438 = vpop.f32.mrf.mxu0
    %v439 = vadd.f32 0.0, %v438
    %440 = vdwg.mxu0
    %441 = vmatpush.msra.mxu0 0.0
    %442 = vmatpush.msra.mxu0 0.0
    %443 = vmatpush.msra.mxu0 0.0
    %444 = vmatpush.msra.mxu0 0.0
    %445 = vmatpush.msra.mxu0 0.0
    %446 = vmatpush.msra.mxu0 0.0
    %447 = vmatpush.msra.mxu0 0.0
    %448 = vmatpush.msra.mxu0 0.0
    %449 = vmatpush.msra.mxu0 0.0
    %450 = vmatpush.msra.mxu0 0.0
    %451 = vmatpush.msra.mxu0 0.0
    %452 = vmatpush.msra.mxu0 0.0
    %453 = vmatpush.msra.mxu0 0.0
    %454 = vmatpush.msra.mxu0 0.0
    %455 = vmatpush.msra.mxu0 0.0
    %456 = vmatpush.msra.mxu0 %v397
    %457 = vmatmul.f32.gmra.mxu0 %v390
    %v458 = vpop.f32.mrf.mxu0
    %v459 = vadd.f32 0.0, %v458
    %460 = vdwg.mxu0
    %461 = vmatpush.msra.mxu0 0.0
    %462 = vmatpush.msra.mxu0 0.0
    %463 = vmatpush.msra.mxu0 0.0
    %464 = vmatpush.msra.mxu0 0.0
    %465 = vmatpush.msra.mxu0 0.0
    %466 = vmatpush.msra.mxu0 0.0
    %467 = vmatpush.msra.mxu0 0.0
    %468 = vmatpush.msra.mxu0 0.0
    %469 = vmatpush.msra.mxu0 0.0
    %470 = vmatpush.msra.mxu0 0.0
    %471 = vmatpush.msra.mxu0 0.0
    %472 = vmatpush.msra.mxu0 0.0
    %473 = vmatpush.msra.mxu0 0.0
    %474 = vmatpush.msra.mxu0 0.0
    %475 = vmatpush.msra.mxu0 0.0
    %476 = vmatpush.msra.mxu0 %v399
    %477 = vmatmul.f32.gmra.mxu0 %v390
    %v478 = vpop.f32.mrf.mxu0
    %v479 = vadd.f32 0.0, %v478
    %480 = vdwg.mxu0
    %v481 = vmul.f32 %v419, 1.442695
    %v482 = vpow.pop %v481
    %v483 = vmul.f32 %v439, 1.442695
    %v484 = vpow.pop %v483
    %v485 = vmul.f32 %v459, 1.442695
    %v486 = vpow.pop %v485
    %v487 = vmul.f32 %v479, 1.442695
    %v488 = vpow.pop %v487
    %v493 = vrot.slane %v482, 7
    %v494 = vrot.slane %v484, 7
    %v495 = vrot.slane %v486, 7
    %v496 = vrot.slane %v488, 7
    %v501 = vmul.f32 %v335, %v493
    %v502 = vmul.f32 %v336, %v494
    %v503 = vmul.f32 %v337, %v495
    %v504 = vmul.f32 %v338, %v496
    %v505 = vmul.f32 %v501, %v227
    %v506 = vmul.f32 %v502, %v228
    %v507 = vmul.f32 %v503, %v229
    %v508 = vmul.f32 %v504, %v230
    %v509 = vmul.f32 %v501, %v231
    %v510 = vmul.f32 %v502, %v232
    %v511 = vmul.f32 %v503, %v233
    %v512 = vmul.f32 %v504, %v234
    %v513 = vmul.f32 %v501, %v235
    %v514 = vmul.f32 %v502, %v236
    %v515 = vmul.f32 %v503, %v237
    %v516 = vmul.f32 %v504, %v238
    %v517 = vmul.f32 %v501, %v239
    %v518 = vmul.f32 %v502, %v240
    %v519 = vmul.f32 %v503, %v241
    %v520 = vmul.f32 %v504, %v242
    %v537 = vrot.slane %v505, 1
    %v538 = vrot.slane %v506, 1
    %v539 = vrot.slane %v507, 1
    %v540 = vrot.slane %v508, 1
    %v541 = vrot.slane %v509, 1
    %v542 = vrot.slane %v510, 1
    %v543 = vrot.slane %v511, 1
    %v544 = vrot.slane %v512, 1
    %v545 = vrot.slane %v513, 1
    %v546 = vrot.slane %v514, 1
    %v547 = vrot.slane %v515, 1
    %v548 = vrot.slane %v516, 1
    %v549 = vrot.slane %v517, 1
    %v550 = vrot.slane %v518, 1
    %v551 = vrot.slane %v519, 1
    %v552 = vrot.slane %v520, 1
    %v569 = vsel %vm392, %v537, 0.0
    %v570 = vrot.slane %v569, 4
    %v571 = vadd.f32 %v569, %v570
    %v572 = vrot.slane %v571, 2
    %v573 = vadd.f32 %v571, %v572
    %v574 = vrot.slane %v573, 1
    %v575 = vadd.f32 %v573, %v574
    %v576 = vsel %vm392, %v538, 0.0
    %v577 = vrot.slane %v576, 4
    %v578 = vadd.f32 %v576, %v577
    %v579 = vrot.slane %v578, 2
    %v580 = vadd.f32 %v578, %v579
    %v581 = vrot.slane %v580, 1
    %v582 = vadd.f32 %v580, %v581
    %v583 = vsel %vm392, %v539, 0.0
    %v584 = vrot.slane %v583, 4
    %v585 = vadd.f32 %v583, %v584
    %v586 = vrot.slane %v585, 2
    %v587 = vadd.f32 %v585, %v586
    %v588 = vrot.slane %v587, 1
    %v589 = vadd.f32 %v587, %v588
    %v590 = vsel %vm392, %v540, 0.0
    %v591 = vrot.slane %v590, 4
    %v592 = vadd.f32 %v590, %v591
    %v593 = vrot.slane %v592, 2
    %v594 = vadd.f32 %v592, %v593
    %v595 = vrot.slane %v594, 1
    %v596 = vadd.f32 %v594, %v595
    %v597 = vsel %vm392, %v541, 0.0
    %v598 = vrot.slane %v597, 4
    %v599 = vadd.f32 %v597, %v598
    %v600 = vrot.slane %v599, 2
    %v601 = vadd.f32 %v599, %v600
    %v602 = vrot.slane %v601, 1
    %v603 = vadd.f32 %v601, %v602
    %v604 = vsel %vm392, %v542, 0.0
    %v605 = vrot.slane %v604, 4
    %v606 = vadd.f32 %v604, %v605
    %v607 = vrot.slane %v606, 2
    %v608 = vadd.f32 %v606, %v607
    %v609 = vrot.slane %v608, 1
    %v610 = vadd.f32 %v608, %v609
    %v611 = vsel %vm392, %v543, 0.0
    %v612 = vrot.slane %v611, 4
    %v613 = vadd.f32 %v611, %v612
    %v614 = vrot.slane %v613, 2
    %v615 = vadd.f32 %v613, %v614
    %v616 = vrot.slane %v615, 1
    %v617 = vadd.f32 %v615, %v616
    %v618 = vsel %vm392, %v544, 0.0
    %v619 = vrot.slane %v618, 4
    %v620 = vadd.f32 %v618, %v619
    %v621 = vrot.slane %v620, 2
    %v622 = vadd.f32 %v620, %v621
    %v623 = vrot.slane %v622, 1
    %v624 = vadd.f32 %v622, %v623
    %v625 = vsel %vm392, %v545, 0.0
    %v626 = vrot.slane %v625, 4
    %v627 = vadd.f32 %v625, %v626
    %v628 = vrot.slane %v627, 2
    %v629 = vadd.f32 %v627, %v628
    %v630 = vrot.slane %v629, 1
    %v631 = vadd.f32 %v629, %v630
    %v632 = vsel %vm392, %v546, 0.0
    %v633 = vrot.slane %v632, 4
    %v634 = vadd.f32 %v632, %v633
    %v635 = vrot.slane %v634, 2
    %v636 = vadd.f32 %v634, %v635
    %v637 = vrot.slane %v636, 1
    %v638 = vadd.f32 %v636, %v637
    %v639 = vsel %vm392, %v547, 0.0
    %v640 = vrot.slane %v639, 4
    %v641 = vadd.f32 %v639, %v640
    %v642 = vrot.slane %v641, 2
    %v643 = vadd.f32 %v641, %v642
    %v644 = vrot.slane %v643, 1
    %v645 = vadd.f32 %v643, %v644
    %v646 = vsel %vm392, %v548, 0.0
    %v647 = vrot.slane %v646, 4
    %v648 = vadd.f32 %v646, %v647
    %v649 = vrot.slane %v648, 2
    %v650 = vadd.f32 %v648, %v649
    %v651 = vrot.slane %v650, 1
    %v652 = vadd.f32 %v650, %v651
    %v653 = vsel %vm392, %v549, 0.0
    %v654 = vrot.slane %v653, 4
    %v655 = vadd.f32 %v653, %v654
    %v656 = vrot.slane %v655, 2
    %v657 = vadd.f32 %v655, %v656
    %v658 = vrot.slane %v657, 1
    %v659 = vadd.f32 %v657, %v658
    %v660 = vsel %vm392, %v550, 0.0
    %v661 = vrot.slane %v660, 4
    %v662 = vadd.f32 %v660, %v661
    %v663 = vrot.slane %v662, 2
    %v664 = vadd.f32 %v662, %v663
    %v665 = vrot.slane %v664, 1
    %v666 = vadd.f32 %v664, %v665
    %v667 = vsel %vm392, %v551, 0.0
    %v668 = vrot.slane %v667, 4
    %v669 = vadd.f32 %v667, %v668
    %v670 = vrot.slane %v669, 2
    %v671 = vadd.f32 %v669, %v670
    %v672 = vrot.slane %v671, 1
    %v673 = vadd.f32 %v671, %v672
    %v674 = vsel %vm392, %v552, 0.0
    %v675 = vrot.slane %v674, 4
    %v676 = vadd.f32 %v674, %v675
    %v677 = vrot.slane %v676, 2
    %v678 = vadd.f32 %v676, %v677
    %v679 = vrot.slane %v678, 1
    %v680 = vadd.f32 %v678, %v679
    %v681 = vmul.f32 %v501, %v139
    %v682 = vmul.f32 %v502, %v140
    %v683 = vmul.f32 %v503, %v141
    %v684 = vmul.f32 %v504, %v142
    %v689 = vrot.slane %v681, 1
    %v690 = vrot.slane %v682, 1
    %v691 = vrot.slane %v683, 1
    %v692 = vrot.slane %v684, 1
    %v697 = vsel %vm392, %v689, 0.0
    %v698 = vrot.slane %v697, 4
    %v699 = vadd.f32 %v697, %v698
    %v700 = vrot.slane %v699, 2
    %v701 = vadd.f32 %v699, %v700
    %v702 = vrot.slane %v701, 1
    %v703 = vadd.f32 %v701, %v702
    %v704 = vsel %vm392, %v690, 0.0
    %v705 = vrot.slane %v704, 4
    %v706 = vadd.f32 %v704, %v705
    %v707 = vrot.slane %v706, 2
    %v708 = vadd.f32 %v706, %v707
    %v709 = vrot.slane %v708, 1
    %v710 = vadd.f32 %v708, %v709
    %v711 = vsel %vm392, %v691, 0.0
    %v712 = vrot.slane %v711, 4
    %v713 = vadd.f32 %v711, %v712
    %v714 = vrot.slane %v713, 2
    %v715 = vadd.f32 %v713, %v714
    %v716 = vrot.slane %v715, 1
    %v717 = vadd.f32 %v715, %v716
    %v718 = vsel %vm392, %v692, 0.0
    %v719 = vrot.slane %v718, 4
    %v720 = vadd.f32 %v718, %v719
    %v721 = vrot.slane %v720, 2
    %v722 = vadd.f32 %v720, %v721
    %v723 = vrot.slane %v722, 1
    %v724 = vadd.f32 %v722, %v723
    %vm725 = vcmp.ne.f32.partialorder %v703, %v703
    %vm726 = vcmp.ne.f32.partialorder %v710, %v710
    %vm727 = vcmp.ne.f32.partialorder %v717, %v717
    %vm728 = vcmp.ne.f32.partialorder %v724, %v724
    %v729 = vsel %vm725, inf, %v703
    %v730 = vsel %vm726, inf, %v710
    %v731 = vsel %vm727, inf, %v717
    %v732 = vsel %vm728, inf, %v724
    %s733 = sld [smem:[#allocation2]]
    %s734 = sld [smem:[#allocation2 + $0x1]]
    %v735 = vstv %s733
    %v736 = vmax.f32 %v735, %v729
    %v737 = vmax.f32 %v735, %v730
    %v738 = vmax.f32 %v735, %v731
    %v739 = vmax.f32 %v735, %v732
    %v740 = vstv %s734
    %v741 = vmin.f32 %v740, %v736
    %v742 = vmin.f32 %v740, %v737
    %v743 = vmin.f32 %v740, %v738
    %v744 = vmin.f32 %v740, %v739
    %v749 = vrot.slane %v501, 1
    %v750 = vrot.slane %v502, 1
    %v751 = vrot.slane %v503, 1
    %v752 = vrot.slane %v504, 1
    %v757 = vsel %vm392, %v749, 0.0
    %v758 = vrot.slane %v757, 4
    %v759 = vadd.f32 %v757, %v758
    %v760 = vrot.slane %v759, 2
    %v761 = vadd.f32 %v759, %v760
    %v762 = vrot.slane %v761, 1
    %v763 = vadd.f32 %v761, %v762
    %v764 = vsel %vm392, %v750, 0.0
    %v765 = vrot.slane %v764, 4
    %v766 = vadd.f32 %v764, %v765
    %v767 = vrot.slane %v766, 2
    %v768 = vadd.f32 %v766, %v767
    %v769 = vrot.slane %v768, 1
    %v770 = vadd.f32 %v768, %v769
    %v771 = vsel %vm392, %v751, 0.0
    %v772 = vrot.slane %v771, 4
    %v773 = vadd.f32 %v771, %v772
    %v774 = vrot.slane %v773, 2
    %v775 = vadd.f32 %v773, %v774
    %v776 = vrot.slane %v775, 1
    %v777 = vadd.f32 %v775, %v776
    %v778 = vsel %vm392, %v752, 0.0
    %v779 = vrot.slane %v778, 4
    %v780 = vadd.f32 %v778, %v779
    %v781 = vrot.slane %v780, 2
    %v782 = vadd.f32 %v780, %v781
    %v783 = vrot.slane %v782, 1
    %v784 = vadd.f32 %v782, %v783
    %v785 = vadd.f32 %v575, 1.0
    %v786 = vadd.f32 %v582, 1.0
    %v787 = vadd.f32 %v589, 1.0
    %v788 = vadd.f32 %v596, 1.0
    %v789 = vadd.f32 %v603, 1.0
    %v790 = vadd.f32 %v610, 1.0
    %v791 = vadd.f32 %v617, 1.0
    %v792 = vadd.f32 %v624, 1.0
    %v793 = vadd.f32 %v631, 1.0
    %v794 = vadd.f32 %v638, 1.0
    %v795 = vadd.f32 %v645, 1.0
    %v796 = vadd.f32 %v652, 1.0
    %v797 = vadd.f32 %v659, 1.0
    %v798 = vadd.f32 %v666, 1.0
    %v799 = vadd.f32 %v673, 1.0
    %v800 = vadd.f32 %v680, 1.0
    %v801 = vsub.f32 %v785, %v763
    %v802 = vsub.f32 %v786, %v770
    %v803 = vsub.f32 %v787, %v777
    %v804 = vsub.f32 %v788, %v784
    %v805 = vsub.f32 %v789, %v763
    %v806 = vsub.f32 %v790, %v770
    %v807 = vsub.f32 %v791, %v777
    %v808 = vsub.f32 %v792, %v784
    %v809 = vsub.f32 %v793, %v763
    %v810 = vsub.f32 %v794, %v770
    %v811 = vsub.f32 %v795, %v777
    %v812 = vsub.f32 %v796, %v784
    %v813 = vsub.f32 %v797, %v763
    %v814 = vsub.f32 %v798, %v770
    %v815 = vsub.f32 %v799, %v777
    %v816 = vsub.f32 %v800, %v784
    %v833 = vrot.slane %v802, 4
    %v834 = vrot.slane %v804, 4
    %v835 = vrot.slane %v806, 4
    %v836 = vrot.slane %v808, 4
    %v837 = vrot.slane %v810, 4
    %v838 = vrot.slane %v812, 4
    %v839 = vrot.slane %v814, 4
    %v840 = vrot.slane %v816, 4
    %vm841 = vcmask 1043456
    %v842 = vsel %vm841, %v801, %v833
    %v843 = vsel %vm841, %v803, %v834
    %v844 = vsel %vm841, %v805, %v835
    %v845 = vsel %vm841, %v807, %v836
    %v846 = vsel %vm841, %v809, %v837
    %v847 = vsel %vm841, %v811, %v838
    %v848 = vsel %vm841, %v813, %v839
    %v849 = vsel %vm841, %v815, %v840
    %v850 = vrot.slane %v844, 7
    %vm851 = vcmask 1041409
    %v852 = vsel %vm851, %v850, %v842
    %vm853 = vcmask 1045509
    %v854 = vsel %vm853, %v850, %v852
    %v855 = vrot.slane %v846, 6
    %vm856 = vcmask 1042434
    %v857 = vsel %vm856, %v855, %v854
    %vm858 = vcmask 1046534
    %v859 = vsel %vm858, %v855, %v857
    %v860 = vrot.slane %v848, 5
    %vm861 = vcmask 1043459
    %v862 = vsel %vm861, %v860, %v859
    %vm863 = vcmask 1047559
    %v864 = vsel %vm863, %v860, %v862
    %v865 = vrot.slane %v845, 7
    %v866 = vsel %vm851, %v865, %v843
    %v867 = vsel %vm853, %v865, %v866
    %v868 = vrot.slane %v847, 6
    %v869 = vsel %vm856, %v868, %v867
    %v870 = vsel %vm858, %v868, %v869
    %v871 = vrot.slane %v849, 5
    %v872 = vsel %vm861, %v871, %v870
    %v873 = vsel %vm863, %v871, %v872
    %876 = vst [vmem:[#allocation12] sm:$0xff] %v864
    %877 = vst [vmem:[#allocation12 + $0x8] sm:$0xff] %v873
    %v882 = vrot.slane %v742, 7
    %v883 = vrot.slane %v743, 6
    %v884 = vrot.slane %v744, 5
    %vm885 = vcmask 1040384
    %v886 = vsel %vm885, %v741, %v882
    %v887 = vsel %vm856, %v883, %v884
    %vm888 = vcmask 1041408
    %v889 = vsel %vm888, %v886, %v887
    %v891 = vlaneseq
    %vm892 = vcmp.ge.s32.totalorder %v891, 0
    %vm893 = vcmp.lt.s32.totalorder %v891, 512
    %vm894 = vmand %vm892, %vm893
    %895 = vst.msk [vmem:[#allocation13] sm:$0xf] %vm894, %v889
    %896 = vst [vmem:[#allocation15] sm:$0x7f] %v749
    %897 = vst [vmem:[#allocation15 + $0x8] sm:$0x7f] %v750
    %898 = vst [vmem:[#allocation15 + $0x10] sm:$0x7f] %v751
    %899 = vst [vmem:[#allocation15 + $0x18] sm:$0x7f] %v752
    // Predicated region
    $region42: #{tpu_custom_call.1} parent=1 // pred_check
      _
    $region43: #{tpu_custom_call.1} parent=1 // pred_check_branch
      %901 = sbr.rel (0) target = $region45
    $region44: #{tpu_custom_call.1} parent=1 // pred_region
      %903 = vsyncadd [#allocation4], 0
      %s905 = sshll.u32 [#allocation12], 4
      %s906 = int_to_ptr.vmem [resolvable:$true] %s905
      %s907 = sshll.u32 %s5, 4
      %s908 = int_to_ptr.hbm [resolvable:$true] %s907
      %910 = dma.vmem_to_hbm [thread:$0]  %s906, 256, %s908, [#allocation4]
    $region45: #{tpu_custom_call.1} parent=1 // pred_fallthru
      _
    // Predicated region
    $region46: #{tpu_custom_call.1} parent=1 // pred_check
      _
    $region47: #{tpu_custom_call.1} parent=1 // pred_check_branch
      %912 = sbr.rel (0) target = $region49
    $region48: #{tpu_custom_call.1} parent=1 // pred_region
      %914 = vsyncadd [#allocation14], 0
      %s916 = sshll.u32 [#allocation13], 4
      %s917 = int_to_ptr.vmem [resolvable:$true] %s916
      %s918 = sshll.u32 %s6, 4
      %s919 = int_to_ptr.hbm [resolvable:$true] %s918
      %921 = dma.vmem_to_hbm [thread:$0]  %s917, 64, %s919, [#allocation14]
    $region49: #{tpu_custom_call.1} parent=1 // pred_fallthru
      _
    // Predicated region
    $region50: #{tpu_custom_call.1} parent=1 // pred_check
      _
    $region51: #{tpu_custom_call.1} parent=1 // pred_check_branch
      %923 = sbr.rel (0) target = $region53
    $region52: #{tpu_custom_call.1} parent=1 // pred_region
      %925 = vsyncadd [#allocation14], 0
      %s927 = sshll.u32 [#allocation15], 4
      %s928 = int_to_ptr.vmem [resolvable:$true] %s927
      %s929 = sshll.u32 %s7, 4
      %s930 = int_to_ptr.hbm [resolvable:$true] %s929
      %932 = dma.vmem_to_hbm [thread:$0]  %s928, 512, %s930, [#allocation14]
    $region53: #{tpu_custom_call.1} parent=1 // pred_fallthru
      _
    // Predicated region
    $region54: #{tpu_custom_call.1} parent=1 // pred_check
      _
    $region55: #{tpu_custom_call.1} parent=1 // pred_check_branch
      %934 = sbr.rel (0) target = $region57
    $region56: #{tpu_custom_call.1} parent=1 // pred_region
      %936 = dma.done [#allocation4], 256
    $region57: #{tpu_custom_call.1} parent=1 // pred_fallthru
      _
    // Predicated region
    $region58: #{tpu_custom_call.1} parent=1 // pred_check
      _
    $region59: #{tpu_custom_call.1} parent=1 // pred_check_branch
      %938 = sbr.rel (0) target = $region61
    $region60: #{tpu_custom_call.1} parent=1 // pred_region
      %940 = dma.done [#allocation14], 64
    $region61: #{tpu_custom_call.1} parent=1 // pred_fallthru
      _
    // Predicated region
    $region62: #{tpu_custom_call.1} parent=1 // pred_check
      _
    $region63: #{tpu_custom_call.1} parent=1 // pred_check_branch
      %942 = sbr.rel (0) target = $region65
    $region64: #{tpu_custom_call.1} parent=1 // pred_region
      %944 = dma.done [#allocation14], 512
    $region65: #{tpu_custom_call.1} parent=1 // pred_fallthru
      _
    %945 = vsyncpa [#allocation3], 1
    %946 = vsyncpa [#allocation8], 1
    %947 = vsyncpa [#allocation11], 1
    %948 = vsyncpa [#allocation4], 1
    %949 = vsyncpa [#allocation14], 1
    %950 = vsyncpa [#allocation5], 1

</llo_original>
